<compile_context>
chip_gen: v6e
topology: v6e:2x2x1
jax: 0.10.0
libtpu: 0.0.40
codegen_flags: <defaults>
</compile_context>

<pallas_src>
import jax
import jax.numpy as jnp
from jax.experimental import pallas as pl
from jax.experimental.pallas import tpu as pltpu

# The exact constants from the PyTorch module's __init__.
LOSS_WEIGHTS = jnp.asarray([
    1.00015549, 7.51934304, 3.23153067, 5.70698071, 2.2573169, 1.0,
    1.07670342, 1.04998035, 1.37827889, 9.0, 2.5069211, 3.75315276,
    3.49343367, 1.96886256, 1.82790865, 1.32515465, 1.47365777, 6.15073554,
    3.09395335, 3.85379364, 5.57853564, 3.53550584, 4.2966888, 3.96174946,
    4.09297436, 3.37820844, 3.70510843, 3.58163235, 3.35135713, 3.40528989,
    4.40474687, 3.73045542, 3.56244893, 3.06550287, 1.82807613, 8.20392347,
    4.42029638, 4.93821596, 4.24775148, 3.6310292, 5.39355859, 4.31881343,
    4.06921439, 3.60191452, 4.41534412, 3.71343288, 4.16736028, 4.6824789,
    4.41206426, 3.09379087, 4.03909905, 3.97157701, 2.10576477, 6.86832305,
    4.74140436, 4.51107208, 5.13457492, 5.13457492, 5.60731637, 5.19140513,
    4.06921439, 5.41185936, 5.23881167, 4.96462708, 5.66331038, 5.52426213,
    6.001617, 5.67937615, 6.23822149, 5.25932782, 5.79044175, 4.72382414,
    5.43447359, 4.09589722, 5.16498326, 4.86974745, 4.22316498, 3.5358764,
    4.19837181, 4.02766207, 4.67873498, 4.24337692, 4.36710707, 4.06921439,
    4.06921439, 4.06921439, 4.06921439, 4.06921439, 4.06921439, 5.69581094,
    7.8798335, 4.73730494, 4.06921439, 4.06921439, 4.06921439, 4.06921439,
    4.06921439, 4.06921439, 4.06921439, 4.06921439, 4.06921439, 4.06921439,
    4.06921439, 4.06921439, 4.06921439, 4.06921439, 4.06921439, 4.06921439,
    4.06921439, 4.06921439, 4.06921439, 4.06921439, 4.06921439, 4.06921439,
    4.06921439, 4.06921439, 4.06921439, 4.06921439, 4.06921439, 4.06921439,
], dtype=jnp.float32)

D = LOSS_WEIGHTS.shape[0]  # 118
TB_MAX = 2048              # rows per tile; 2 inputs x 2 pipeline bufs x (2048x128xf32) = 4 MiB


def _cdiv(a, b):
    return -(-a // b)


def _round_up(x, m):
    return ((x + m - 1) // m) * m


def _tensorcores_per_chip():
    """2 on multi-TensorCore chips (v7x-style megacore), 1 on v5e/v6e. Defensive."""
    try:
        info = pltpu.get_tpu_info()
        for name in ("num_cores", "core_count", "num_tensorcores",
                     "tensorcores_per_chip", "num_cores_per_chip"):
            v = getattr(info, name, None)
            if isinstance(v, int) and 1 <= v <= 8:
                return v
    except Exception:
        pass
    try:
        kind = jax.devices()[0].device_kind.lower()
        if "v7" in kind:
            return 2
    except Exception:
        pass
    return 1


def _make_kernel(TB, B, tiles_per_core, need_mask):
    def kernel(y_ref, yhat_ref, w_ref, out_ref, acc_ref):
        c = pl.program_id(0)   # core ("parallel") axis
        i = pl.program_id(1)   # batch-tile reduction ("arbitrary") axis

        @pl.when(i == 0)
        def _init():
            acc_ref[...] = jnp.zeros_like(acc_ref)

        # Hot path: native-dtype subtract (bf16 stays bf16 on the VPU), f32 square,
        # full-tile unmasked accumulate. No XLU reduce, no masked stores per step.
        diff = yhat_ref[...] - y_ref[...]
        d32 = diff.astype(jnp.float32)
        sq = d32 * d32

        if need_mask:
            t = c * tiles_per_core + i        # logical (unclamped) tile index
            valid = B - t * TB                # rows of this tile holding real data

            @pl.when(valid >= TB)             # interior tile: zero masking overhead
            def _full():
                acc_ref[...] += sq

            @pl.when(valid < TB)              # ragged last tile / clamped dup tile
            def _partial():
                rows = jax.lax.broadcasted_iota(jnp.int32, sq.shape, 0)
                # where() selects 0 for invalid rows, so stale/NaN data is harmless.
                acc_ref[...] += jnp.where(rows < valid, sq, 0.0)
        else:
            acc_ref[...] += sq

        @pl.when(i == tiles_per_core - 1)
        def _finalize():
            # Once per core: fold the (TB, D) accumulator down to (8, D) with plain
            # vreg adds over 8-row chunks, then apply the pre-scaled weights.
            def body(r, carry):
                off = pl.multiple_of(r * 8, 8)
                return carry + acc_ref[pl.ds(off, 8), :]

            red8 = jax.lax.fori_loop(1, TB // 8, body, acc_ref[0:8, :])
            out_ref[...] = red8 * w_ref[...]

    return kernel


def weighted_mse_loss(y, y_hat, weights=LOSS_WEIGHTS):
    """y, y_hat: (B, D) arrays (any float dtype). Returns scalar f32 weighted MSE."""
    assert y.shape == y_hat.shape and y.ndim == 2
    B, Dd = y.shape
    assert Dd == weights.shape[0] and B >= 1

    ncores = _tensorcores_per_chip()
    if B < 8 * ncores:
        ncores = 1

    # Balanced tiling: ~TB_MAX rows per tile, rounded to a multiple of 8, capped so
    # every block's row-start lies inside the array (only the last tile is ragged).
    n_tiles_total = ncores * max(1, _cdiv(_cdiv(B, ncores), TB_MAX))
    TB = _round_up(_cdiv(B, n_tiles_total), 8)
    if B >= 8:
        TB = min(TB, (B // 8) * 8)
    n_tiles = _cdiv(B, TB)                     # tiles that overlap real rows
    tiles_per_core = _cdiv(n_tiles, ncores)
    need_mask = (B % TB != 0) or (ncores * tiles_per_core != n_tiles)

    # Weights with the mean's 1/(B*D) folded in, pre-broadcast to 8 sublanes so the
    # finalize multiply is a plain full-vreg op (applied once per core, not per row).
    scale = 1.0 / float(B * Dd)
    w8 = jnp.broadcast_to((weights.astype(jnp.float32) * scale).reshape(1, Dd), (8, Dd))

    def in_idx(c, i):
        # Clamp so duplicate tiles (when n_tiles isn't a multiple of ncores) re-read
        # an in-bounds tile; the kernel's row mask zeroes their contribution.
        return (jnp.minimum(c * tiles_per_core + i, n_tiles - 1), 0)

    itemsize = jnp.dtype(y.dtype).itemsize
    kernel = _make_kernel(TB, B, tiles_per_core, need_mask)

    partials = pl.pallas_call(
        kernel,
        out_shape=jax.ShapeDtypeStruct((ncores * 8, Dd), jnp.float32),
        grid_spec=pltpu.PrefetchScalarGridSpec(
            num_scalar_prefetch=0,
            grid=(ncores, tiles_per_core),
            in_specs=[
                pl.BlockSpec((TB, Dd), in_idx),
                pl.BlockSpec((TB, Dd), in_idx),
                # Weights stay VMEM-resident: same block every grid step.
                pl.BlockSpec((8, Dd), lambda c, i: (0, 0)),
            ],
            out_specs=pl.BlockSpec((8, Dd), lambda c, i: (c, 0)),
            scratch_shapes=[pltpu.VMEM((TB, Dd), jnp.float32)],
        ),
        compiler_params=pltpu.CompilerParams(
            dimension_semantics=("parallel", "arbitrary"),
            vmem_limit_bytes=32 * 1024 * 1024,
        ),
        cost_estimate=pl.CostEstimate(
            flops=4 * B * Dd,
            transcendentals=0,
            bytes_accessed=2 * B * Dd * itemsize + 8 * Dd * 4 + ncores * 8 * Dd * 4,
        ),
    )(y, y_hat, w8)

    # Tiny cross-lane/cross-core reduce of the per-core (8, D) weighted partials.
    return jnp.sum(partials)


if __name__ == "__main__":
    key = jax.random.PRNGKey(0)
    k1, k2, k3, k4 = jax.random.split(key, 4)

    # Small shape consistent with the module: (batch, 118).
    B = 8
    y = jax.random.normal(k1, (B, D), dtype=jnp.float32)
    y_hat = jax.random.normal(k2, (B, D), dtype=jnp.float32)
    loss = jax.block_until_ready(weighted_mse_loss(y, y_hat))
    ref = jnp.mean(LOSS_WEIGHTS * (y_hat - y) ** 2)
    assert jnp.allclose(loss, ref, rtol=1e-5, atol=1e-6), (loss, ref)

    # Ragged batch exercises the in-kernel row mask (no HBM padding anywhere).
    B2 = 20
    y2 = jax.random.normal(k3, (B2, D), dtype=jnp.float32)
    yh2 = jax.random.normal(k4, (B2, D), dtype=jnp.float32)
    loss2 = jax.block_until_ready(weighted_mse_loss(y2, yh2))
    ref2 = jnp.mean(LOSS_WEIGHTS * (yh2 - y2) ** 2)
    assert jnp.allclose(loss2, ref2, rtol=1e-5, atol=1e-6), (loss2, ref2)

    print("KERNEL_OK")
</pallas_src>

<mosaic_0001>
module attributes {stable_mosaic.version = 11 : i64} {
  func.func @kernel(%arg0: i32, %arg1: i32, %arg2: memref<8x120xf32, #tpu.memory_space<vmem>>, %arg3: memref<8x120xf32, #tpu.memory_space<vmem>>, %arg4: memref<8x120xf32, #tpu.memory_space<vmem>>, %arg5: memref<8x120xf32, #tpu.memory_space<vmem>>, %arg6: memref<8x120xf32, #tpu.memory_space<vmem>>) attributes {dimension_semantics = [#tpu.dimension_semantics<parallel>, #tpu.dimension_semantics<arbitrary>], iteration_bounds = array<i64: 1, 1>, scalar_prefetch = 0 : i64, scratch_operands = 1 : i64, tpu.core_type = #tpu.core_type<tc>, window_params = [{transform_indices = @transform_0, window_bounds = array<i64: 8, 120>}, {transform_indices = @transform_1, window_bounds = array<i64: 8, 120>}, {pipeline_mode = #tpu.pipeline_mode<synchronous>, transform_indices = @transform_2, window_bounds = array<i64: 8, 120>}, {transform_indices = @transform_3, window_bounds = array<i64: 8, 120>}]} {
    %c0_i32 = arith.constant 0 : i32
    %0 = arith.cmpi eq, %arg1, %c0_i32 : i32
    %1 = arith.extui %0 : i1 to i32
    %c0_i32_0 = arith.constant 0 : i32
    %2 = arith.cmpi ne, %1, %c0_i32_0 : i32
    scf.if %2 {
      %cst = arith.constant 0.000000e+00 : f32
      %13 = vector.broadcast %cst : f32 to vector<8x120xf32>
      %c0_10 = arith.constant 0 : index
      %c0_11 = arith.constant 0 : index
      %14 = vector.load %arg6[%c0_10, %c0_11] : memref<8x120xf32, #tpu.memory_space<vmem>>, vector<8x120xf32>
      tpu.vector_store %arg6[%c0_10, %c0_11], %13 {strides = array<i32>} : memref<8x120xf32, #tpu.memory_space<vmem>>, vector<8x120xf32>,
    } else {
    }
    %c0 = arith.constant 0 : index
    %c0_1 = arith.constant 0 : index
    %3 = vector.load %arg3[%c0, %c0_1] : memref<8x120xf32, #tpu.memory_space<vmem>>, vector<8x120xf32>
    %c0_2 = arith.constant 0 : index
    %c0_3 = arith.constant 0 : index
    %4 = vector.load %arg2[%c0_2, %c0_3] : memref<8x120xf32, #tpu.memory_space<vmem>>, vector<8x120xf32>
    %5 = arith.subf %3, %4 : vector<8x120xf32>
    %6 = arith.mulf %5, %5 : vector<8x120xf32>
    %c0_4 = arith.constant 0 : index
    %c0_5 = arith.constant 0 : index
    %7 = vector.load %arg6[%c0_4, %c0_5] : memref<8x120xf32, #tpu.memory_space<vmem>>, vector<8x120xf32>
    %8 = arith.addf %7, %6 : vector<8x120xf32>
    %c0_6 = arith.constant 0 : index
    %c0_7 = arith.constant 0 : index
    %9 = vector.load %arg6[%c0_6, %c0_7] : memref<8x120xf32, #tpu.memory_space<vmem>>, vector<8x120xf32>
    tpu.vector_store %arg6[%c0_6, %c0_7], %8 {strides = array<i32>} : memref<8x120xf32, #tpu.memory_space<vmem>>, vector<8x120xf32>,
    %c0_i32_8 = arith.constant 0 : i32
    %10 = arith.cmpi eq, %arg1, %c0_i32_8 : i32
    %11 = arith.extui %10 : i1 to i32
    %c0_i32_9 = arith.constant 0 : i32
    %12 = arith.cmpi ne, %11, %c0_i32_9 : i32
    scf.if %12 {
      %c0_10 = arith.constant 0 : index
      %c0_11 = arith.constant 0 : index
      %13 = vector.load %arg6[%c0_10, %c0_11] : memref<8x120xf32, #tpu.memory_space<vmem>>, vector<8x120xf32>
      %c1_i32 = arith.constant 1 : i32
      %c0_i32_12 = arith.constant 0 : i32
      %14 = arith.addi %c1_i32, %c0_i32_12 : i32
      %c1_i32_13 = arith.constant 1 : i32
      %15 = scf.for %arg7 = %c1_i32 to %14 step %c1_i32_13 iter_args(%arg8 = %13) -> (vector<8x120xf32>)  : i32 {
        %c8_i32 = arith.constant 8 : i32
        %19 = arith.muli %arg7, %c8_i32 : i32
        %20 = tpu.assume_multiple %19, 8 : i32
        %21 = arith.index_cast %20 : i32 to index
        %c0_19 = arith.constant 0 : index
        %22 = vector.load %arg6[%21, %c0_19] : memref<8x120xf32, #tpu.memory_space<vmem>>, vector<8x120xf32>
        %23 = arith.addf %arg8, %22 : vector<8x120xf32>
        scf.yield %23 : vector<8x120xf32>
      }
      %c0_i32_14 = arith.constant 0 : i32
      %c0_15 = arith.constant 0 : index
      %c0_16 = arith.constant 0 : index
      %16 = vector.load %arg4[%c0_15, %c0_16] : memref<8x120xf32, #tpu.memory_space<vmem>>, vector<8x120xf32>
      %17 = arith.mulf %15, %16 : vector<8x120xf32>
      %c0_17 = arith.constant 0 : index
      %c0_18 = arith.constant 0 : index
      %18 = vector.load %arg5[%c0_17, %c0_18] : memref<8x120xf32, #tpu.memory_space<vmem>>, vector<8x120xf32>
      tpu.vector_store %arg5[%c0_17, %c0_18], %17 {strides = array<i32>} : memref<8x120xf32, #tpu.memory_space<vmem>>, vector<8x120xf32>,
    } else {
    }
    return
  }
  func.func @transform_0(%arg0: i32, %arg1: i32) -> (i32, i32) {
    %c1_i32 = arith.constant 1 : i32
    %0 = arith.muli %arg0, %c1_i32 : i32
    %1 = arith.addi %0, %arg1 : i32
    %c0_i32 = arith.constant 0 : i32
    %2 = arith.minsi %1, %c0_i32 : i32
    %c0_i32_0 = arith.constant 0 : i32
    %c0_i32_1 = arith.constant 0 : i32
    return %2, %c0_i32_0 : i32, i32
  }
  func.func @transform_1(%arg0: i32, %arg1: i32) -> (i32, i32) {
    %c1_i32 = arith.constant 1 : i32
    %0 = arith.muli %arg0, %c1_i32 : i32
    %1 = arith.addi %0, %arg1 : i32
    %c0_i32 = arith.constant 0 : i32
    %2 = arith.minsi %1, %c0_i32 : i32
    %c0_i32_0 = arith.constant 0 : i32
    %c0_i32_1 = arith.constant 0 : i32
    return %2, %c0_i32_0 : i32, i32
  }
  func.func @transform_2(%arg0: i32, %arg1: i32) -> (i32, i32) {
    %c0_i32 = arith.constant 0 : i32
    %c0_i32_0 = arith.constant 0 : i32
    %c0_i32_1 = arith.constant 0 : i32
    return %c0_i32, %c0_i32_0 : i32, i32
  }
  func.func @transform_3(%arg0: i32, %arg1: i32) -> (i32, i32) {
    %c0_i32 = arith.constant 0 : i32
    %c0_i32_0 = arith.constant 0 : i32
    return %arg0, %c0_i32 : i32, i32
  }
}

</mosaic_0001>

<llo_original>
// kernel: tpu_custom_call.1
$region0: #{tpu_custom_call.1}
  #allocation0 [shape = 'u32[]', space=smem, size = 0x4, offset = 0x4, fixed_abs, tag = 'smem constant byte address 0x4 - core index']
  #allocation1 [shape = 'u32[144,128]{1,0:T(1,128)}', space=vmem, size = 0x12000, scoped, tag = 'internal scratch']
  #allocation2 [shape = 'f32[8,120]{1,0:T(8,128)}', space=vmem, size = 0x1000, scoped, tag = 'scratch operand']
  %s0 = inlined_call_operand.hbm [shape: f32[8,120], index: 0, kind: input, shape index: {}]
  %s1 = inlined_call_operand.hbm [shape: f32[8,120], index: 1, kind: input, shape index: {}]
  %s2 = inlined_call_operand.hbm [shape: f32[8,120], index: 2, kind: input, shape index: {}]
  %s3 = inlined_call_operand.hbm [shape: f32[8,120], index: 3, kind: output, shape index: {}]
  %s4 = sld [smem:[#allocation0]]
  $region42: #{tpu_custom_call.1} parent=0
    _
  %s6 = ssub.s32 1, %s4
  %s7 = scalar_select 0, %s6, %s4
  $region1: #{tpu_custom_call.1} parent=0
    #allocation3 [shape = 'u8[4096]{0}', space=vmem, size = 0x1000, scoped, tag = 'input window, operand 0, single buffered']
    #allocation4 [shape = 's32[1]{0}', space=sflag, size = 0x4, scoped, tag = 'scoped memory for tpu_custom_call.1']
    #allocation5 [shape = 's32[1]{0}', space=sflag, size = 0x4, scoped, tag = 'scoped memory for tpu_custom_call.1']
    #allocation6 [shape = 'u8[4096]{0}', space=vmem, size = 0x1000, scoped, tag = 'input window, operand 1, single buffered']
    #allocation7 [shape = 's32[1]{0}', space=sflag, size = 0x4, scoped, tag = 'scoped memory for tpu_custom_call.1']
    #allocation8 [shape = 'u8[4096]{0}', space=vmem, size = 0x1000, scoped, tag = 'input window, operand 2, single buffered']
    #allocation9 [shape = 'u8[4096]{0}', space=vmem, size = 0x1000, scoped, tag = 'output window, operand 0, single buffered']
    %8 = vsyncpa [#allocation4], 0
    %9 = vsyncpa [#allocation7], 0
    %10 = vsyncpa [#allocation5], 0
    // Predicated region
    $region2: #{tpu_custom_call.1} parent=1 // pred_check
      _
    $region3: #{tpu_custom_call.1} parent=1 // pred_check_branch
      %12 = sbr.rel (0) target = $region5
    $region4: #{tpu_custom_call.1} parent=1 // pred_region
      %s13 = sadd.s32 0, 0
      %p14 = scmp.lt.s32.totalorder %s13, 0
      %s15 = scalar_select %p14, %s13, 0
      %s17 = ssub.s32 128, 128
      %18 = vsyncadd [#allocation4], %s17
      %s19 = smul.addr %s15, 128
      %s20 = scalar_lea.hbm %s0, %s19
      %s22 = sshll.u32 [#allocation3], 4
      %s23 = int_to_ptr.vmem [resolvable:$true] %s22
      %25 = dma.hbm_to_vmem [thread:$0]  %s20, 128, %s23, [#allocation4]
    $region5: #{tpu_custom_call.1} parent=1 // pred_fallthru
      _
    // Predicated region
    $region6: #{tpu_custom_call.1} parent=1 // pred_check
      _
    $region7: #{tpu_custom_call.1} parent=1 // pred_check_branch
      %27 = sbr.rel (0) target = $region9
    $region8: #{tpu_custom_call.1} parent=1 // pred_region
      %s28 = sadd.s32 0, 0
      %p29 = scmp.lt.s32.totalorder %s28, 0
      %s30 = scalar_select %p29, %s28, 0
      %s32 = ssub.s32 128, 128
      %33 = vsyncadd [#allocation7], %s32
      %s34 = smul.addr %s30, 128
      %s35 = scalar_lea.hbm %s1, %s34
      %s37 = sshll.u32 [#allocation6], 4
      %s38 = int_to_ptr.vmem [resolvable:$true] %s37
      %40 = dma.hbm_to_vmem [thread:$0]  %s35, 128, %s38, [#allocation7]
    $region9: #{tpu_custom_call.1} parent=1 // pred_fallthru
      _
    // Predicated region
    $region10: #{tpu_custom_call.1} parent=1 // pred_check
      _
    $region11: #{tpu_custom_call.1} parent=1 // pred_check_branch
      %42 = sbr.rel (0) target = $region13
    $region12: #{tpu_custom_call.1} parent=1 // pred_region
      %s44 = ssub.s32 128, 128
      %45 = vsyncadd [#allocation7], %s44
      %s47 = sshll.u32 [#allocation8], 4
      %s48 = int_to_ptr.vmem [resolvable:$true] %s47
      %50 = dma.hbm_to_vmem [thread:$0]  %s2, 128, %s48, [#allocation7]
    $region13: #{tpu_custom_call.1} parent=1 // pred_fallthru
      _
    // Predicated region
    $region14: #{tpu_custom_call.1} parent=1 // pred_check
      _
    $region15: #{tpu_custom_call.1} parent=1 // pred_check_branch
      %52 = sbr.rel (0) target = $region17
    $region16: #{tpu_custom_call.1} parent=1 // pred_region
      %53 = dma.done [#allocation4], 128
    $region17: #{tpu_custom_call.1} parent=1 // pred_fallthru
      _
    // Predicated region
    $region18: #{tpu_custom_call.1} parent=1 // pred_check
      _
    $region19: #{tpu_custom_call.1} parent=1 // pred_check_branch
      %55 = sbr.rel (0) target = $region21
    $region20: #{tpu_custom_call.1} parent=1 // pred_region
      %56 = dma.done [#allocation7], 128
    $region21: #{tpu_custom_call.1} parent=1 // pred_fallthru
      _
    // Predicated region
    $region22: #{tpu_custom_call.1} parent=1 // pred_check
      _
    $region23: #{tpu_custom_call.1} parent=1 // pred_check_branch
      %58 = sbr.rel (0) target = $region25
    $region24: #{tpu_custom_call.1} parent=1 // pred_region
      %59 = dma.done [#allocation7], 128
    $region25: #{tpu_custom_call.1} parent=1 // pred_fallthru
      _
    %s60 = sadd.s32 0, 0
    %p61 = scmp.lt.s32.totalorder %s60, 0
    %s62 = scalar_select %p61, %s60, 0
    %s63 = sadd.s32 0, 0
    %p64 = scmp.lt.s32.totalorder %s63, 0
    %s65 = scalar_select %p64, %s63, 0
    %p66 = scmp.eq.s32.totalorder 0, 0
    // Predicated region
    $region26: #{tpu_custom_call.1} parent=1 // pred_check
      %p67 = pneg %p66
    $region27: #{tpu_custom_call.1} parent=1 // pred_check_branch
      %69 = sbr.rel (%p67) target = $region29
    $region28: #{tpu_custom_call.1} parent=1 // pred_region
      %vm70 = vcmask 982016
      %71 = vst.msk [vmem:[#allocation2] sm:$0xff] %vm70, 0.0
    $region29: #{tpu_custom_call.1} parent=1 // pred_fallthru
      _
    %v72 = vld [vmem:[#allocation6] sm:$0xff]
    %v73 = vld [vmem:[#allocation3] sm:$0xff]
    %v74 = vsub.f32 %v72, %v73
    %v75 = vmul.f32 %v74, %v74
    %v76 = vld [vmem:[#allocation2] sm:$0xff]
    %v77 = vadd.f32 %v76, %v75
    %vm78 = vcmask 982016
    %79 = vst.msk [vmem:[#allocation2] sm:$0xff] %vm78, %v77
    // Predicated region
    $region30: #{tpu_custom_call.1} parent=1 // pred_check
      %p80 = pneg %p66
    $region31: #{tpu_custom_call.1} parent=1 // pred_check_branch
      %82 = sbr.rel (%p80) target = $region33
    $region32: #{tpu_custom_call.1} parent=1 // pred_region
      %v83 = vld [vmem:[#allocation2] sm:$0xff]
      %v84 = vld [vmem:[#allocation8] sm:$0xff]
      %v85 = vmul.f32 %v83, %v84
      %86 = vst.msk [vmem:[#allocation9] sm:$0xff] %vm78, %v85
    $region33: #{tpu_custom_call.1} parent=1 // pred_fallthru
      _
    // Predicated region
    $region34: #{tpu_custom_call.1} parent=1 // pred_check
      _
    $region35: #{tpu_custom_call.1} parent=1 // pred_check_branch
      %88 = sbr.rel (0) target = $region37
    $region36: #{tpu_custom_call.1} parent=1 // pred_region
      %s90 = ssub.s32 128, 128
      %91 = vsyncadd [#allocation5], %s90
      %s93 = sshll.u32 [#allocation9], 4
      %s94 = int_to_ptr.vmem [resolvable:$true] %s93
      %96 = dma.vmem_to_hbm [thread:$0]  %s94, 128, %s3, [#allocation5]
    $region37: #{tpu_custom_call.1} parent=1 // pred_fallthru
      _
    // Predicated region
    $region38: #{tpu_custom_call.1} parent=1 // pred_check
      _
    $region39: #{tpu_custom_call.1} parent=1 // pred_check_branch
      %98 = sbr.rel (0) target = $region41
    $region40: #{tpu_custom_call.1} parent=1 // pred_region
      %99 = dma.done [#allocation5], 128
    $region41: #{tpu_custom_call.1} parent=1 // pred_fallthru
      _
    %100 = vsyncpa [#allocation4], 1
    %101 = vsyncpa [#allocation7], 1
    %102 = vsyncpa [#allocation5], 1

</llo_original>
